<compile_context>
chip_gen: v5e
topology: v5e:2x2
jax: 0.10.0
libtpu: 0.0.40
codegen_flags: <defaults>
</compile_context>

<pallas_src>
import math
from functools import partial

import jax
import jax.numpy as jnp
from jax.experimental import pallas as pl
from jax.experimental.pallas import tpu as pltpu


# Safe on every generation: v5e/v6e have 128 MiB physical VMEM, v7x has 64 MiB.
_VMEM_LIMIT = 48 * 1024 * 1024


def _pick_tile(dim, candidates):
    """Largest candidate tile that evenly divides `dim`, else the full dim."""
    for c in candidates:
        if dim >= c and dim % c == 0:
            return c
    return dim


def _pick_head_group(n_heads, max_group=8):
    """Largest divisor of n_heads that is <= max_group (bounds score temporaries)."""
    for g in range(min(n_heads, max_group), 0, -1):
        if n_heads % g == 0:
            return g
    return 1


# ---------------------------------------------------------------------------
# Fused projection: y = x @ W + b with W holding 1..3 stacked [Din, D] linears.
# One full-width matmul per sequence tile (weight VMEM-resident across the grid),
# outputs written head-split [B, H, S, dk] (what flash_mha consumes) in bf16.
# ---------------------------------------------------------------------------
def _proj_kernel(x_ref, w_ref, b_ref, *out_refs, n_heads, d_k):
    # x: (ts, Din) bf16 ; w: (Din, n_out*H*dk) bf16 resident ; b: (1, n_out*H*dk) f32
    y = jnp.dot(x_ref[0], w_ref[...], preferred_element_type=jnp.float32)
    y = (y + b_ref[...]).astype(out_refs[0].dtype)          # (ts, n_out*H*dk) bf16
    # Head split: one contiguous (ts, dk) store per (projection, head).
    for p, ref in enumerate(out_refs):
        for h in range(n_heads):
            c0 = (p * n_heads + h) * d_k
            ref[0, h] = y[:, c0:c0 + d_k]


def project_heads(x, w, b, n_heads, d_k):
    """x: [B,S,Din] bf16 ; w: [Din, n_out*H*dk] bf16 ; b: [1, n_out*H*dk] f32
       -> tuple of n_out arrays, each [B, H, S, dk] bf16."""
    B, S, Din = x.shape
    W = w.shape[1]
    n_out = W // (n_heads * d_k)
    ts = _pick_tile(S, (512, 256, 128))
    grid = (B, S // ts)
    head_shape = jax.ShapeDtypeStruct((B, n_heads, S, d_k), jnp.bfloat16)
    # TODO(synk): for very large d_model (>~2k) the resident [Din, n_out*D]
    #             weight should get an output-column grid axis.
    out = pl.pallas_call(
        partial(_proj_kernel, n_heads=n_heads, d_k=d_k),
        grid=grid,
        out_shape=tuple(head_shape for _ in range(n_out)),
        in_specs=[
            pl.BlockSpec((1, ts, Din), lambda bb, si: (bb, si, 0)),
            pl.BlockSpec((Din, W), lambda bb, si: (0, 0)),   # resident weight
            pl.BlockSpec((1, W), lambda bb, si: (0, 0)),     # resident bias
        ],
        out_specs=tuple(
            pl.BlockSpec((1, n_heads, ts, d_k), lambda bb, si: (bb, 0, si, 0))
            for _ in range(n_out)),
        compiler_params=pltpu.CompilerParams(
            dimension_semantics=("parallel", "parallel"),
            vmem_limit_bytes=_VMEM_LIMIT),
    )(x, w, b)
    return tuple(out)


# ---------------------------------------------------------------------------
# Flash-style multi-head attention: online softmax over KV blocks, a group of
# <= 8 heads per grid step.  q/k/v are [B, H, S, dk] bf16 (q pre-scaled by
# 1/sqrt(dk) via the projection weights); the mask is an additive f32 bias of
# shape [B, 1, Sk] or [B, Sq, Sk].  Output is lane-dense [B, Sq, H*dk] bf16.
# ---------------------------------------------------------------------------
def _flash_kernel(q_ref, k_ref, v_ref, bias_ref, o_ref,
                  m_sc, l_sc, acc_sc, *, head_group):
    kv = pl.program_id(3)

    @pl.when(kv == 0)
    def _():
        m_sc[...] = jnp.full(m_sc.shape, -jnp.inf, jnp.float32)
        l_sc[...] = jnp.zeros(l_sc.shape, jnp.float32)
        acc_sc[...] = jnp.zeros(acc_sc.shape, jnp.float32)

    q = q_ref[0]            # (Hg, tq,  dk) bf16, already scaled by 1/sqrt(dk)
    k = k_ref[0]            # (Hg, tkv, dk) bf16
    v = v_ref[0]            # (Hg, tkv, dk) bf16

    s = jnp.einsum('hqd,hkd->hqk', q, k,
                   preferred_element_type=jnp.float32)          # (Hg, tq, tkv) f32
    s = s + bias_ref[0][None]                                    # additive mask bias

    m_prev = m_sc[...]                                           # (Hg, tq, 1)
    m_new = jnp.maximum(m_prev, jnp.max(s, axis=-1, keepdims=True))
    alpha = jnp.exp(m_prev - m_new)
    p = jnp.exp(s - m_new)                                       # f32 (EUP)
    l_sc[...] = alpha * l_sc[...] + jnp.sum(p, axis=-1, keepdims=True)
    acc_sc[...] = alpha * acc_sc[...] + jnp.einsum(
        'hqk,hkd->hqd', p.astype(v.dtype), v,
        preferred_element_type=jnp.float32)
    m_sc[...] = m_new

    @pl.when(kv == pl.num_programs(3) - 1)
    def _():
        inv_l = pl.reciprocal(l_sc[...], approx=True)            # EUP slot
        # Lane-axis concat of per-head slabs -> fully lane-dense (tq, Hg*dk) store.
        ctx = jnp.concatenate(
            [acc_sc[h] * inv_l[h] for h in range(head_group)], axis=-1)
        o_ref[0] = ctx.astype(o_ref.dtype)


def flash_mha(q, k, v, bias):
    """q/k/v: [B, H, S, dk] bf16 ; bias: [B, 1 or Sq, Sk] f32 -> [B, Sq, H*dk] bf16."""
    B, H, Sq, dk = q.shape
    Sk = k.shape[2]
    hg = _pick_head_group(H)
    tq = _pick_tile(Sq, (512, 256, 128))
    tkv = _pick_tile(Sk, (256, 128))
    grid = (B, H // hg, Sq // tq, Sk // tkv)

    if bias.shape[1] == 1:       # key-padding mask, shared across query rows
        bias_spec = pl.BlockSpec((1, 1, tkv), lambda b, g, qi, ki: (b, 0, ki))
    else:                        # full [B, Sq, Sk] mask (e.g. causal)
        bias_spec = pl.BlockSpec((1, tq, tkv), lambda b, g, qi, ki: (b, qi, ki))

    return pl.pallas_call(
        partial(_flash_kernel, head_group=hg),
        grid=grid,
        out_shape=jax.ShapeDtypeStruct((B, Sq, H * dk), jnp.bfloat16),
        in_specs=[
            pl.BlockSpec((1, hg, tq, dk), lambda b, g, qi, ki: (b, g, qi, 0)),
            pl.BlockSpec((1, hg, tkv, dk), lambda b, g, qi, ki: (b, g, ki, 0)),
            pl.BlockSpec((1, hg, tkv, dk), lambda b, g, qi, ki: (b, g, ki, 0)),
            bias_spec,
        ],
        out_specs=pl.BlockSpec((1, tq, hg * dk), lambda b, g, qi, ki: (b, qi, g)),
        scratch_shapes=[
            pltpu.VMEM((hg, tq, 1), jnp.float32),    # running max
            pltpu.VMEM((hg, tq, 1), jnp.float32),    # running denominator
            pltpu.VMEM((hg, tq, dk), jnp.float32),   # running numerator
        ],
        compiler_params=pltpu.CompilerParams(
            dimension_semantics=("parallel", "parallel", "parallel", "arbitrary"),
            vmem_limit_bytes=_VMEM_LIMIT),
    )(q, k, v, bias)


# ---------------------------------------------------------------------------
# Output projection: out = ctx @ Wo + bo with lane-dense [B, S, D] ctx and a
# VMEM-resident weight (full-D contraction per step, no reduction grid axis).
# ---------------------------------------------------------------------------
def _out_proj_kernel(x_ref, w_ref, b_ref, o_ref):
    y = jnp.dot(x_ref[0], w_ref[...], preferred_element_type=jnp.float32)
    o_ref[0] = (y + b_ref[...]).astype(o_ref.dtype)


def out_project(ctx, w_o, b_o):
    """ctx: [B, S, D] bf16 ; w_o: [D, Dout] bf16 ; b_o: [1, Dout] f32 -> [B, S, Dout] f32."""
    B, S, D = ctx.shape
    Dout = w_o.shape[1]
    ts = _pick_tile(S, (512, 256, 128))
    tn = _pick_tile(Dout, (2048, 1024, 512, 256, 128))
    grid = (B, S // ts, Dout // tn)
    return pl.pallas_call(
        _out_proj_kernel,
        grid=grid,
        out_shape=jax.ShapeDtypeStruct((B, S, Dout), jnp.float32),
        in_specs=[
            pl.BlockSpec((1, ts, D), lambda b, si, ni: (b, si, 0)),
            pl.BlockSpec((D, tn), lambda b, si, ni: (0, ni)),
            pl.BlockSpec((1, tn), lambda b, si, ni: (0, ni)),
        ],
        out_specs=pl.BlockSpec((1, ts, tn), lambda b, si, ni: (b, si, ni)),
        compiler_params=pltpu.CompilerParams(
            dimension_semantics=("parallel", "parallel", "parallel"),
            vmem_limit_bytes=_VMEM_LIMIT),
    )(ctx, w_o, b_o)


# ---------------------------------------------------------------------------
# Full MultiHeadedAttention forward.
# ---------------------------------------------------------------------------
def multi_headed_attention(query, key, value, mask, params, n_heads):
    B, Sq, D = query.shape
    Sk = key.shape[1]
    assert D % n_heads == 0
    dk = D // n_heads
    scale = 1.0 / math.sqrt(dk)

    # One-time host-side parameter plumbing: PyTorch Linear stores W as [out, in];
    # transpose to [in, out], cast to bf16, and fold the 1/sqrt(dk) attention
    # scale into the q projection (weights AND bias) so the kernel never scales.
    wq = (params["wq"].T * scale).astype(jnp.bfloat16)
    wk = params["wk"].T.astype(jnp.bfloat16)
    wv = params["wv"].T.astype(jnp.bfloat16)
    bq = (params["bq"] * scale).astype(jnp.float32)
    bk = params["bk"].astype(jnp.float32)
    bv = params["bv"].astype(jnp.float32)
    w_o = params["wo"].T.astype(jnp.bfloat16)            # [D, D]
    b_o = params["bo"].reshape(1, D).astype(jnp.float32)

    xq = query.astype(jnp.bfloat16)
    xk = key.astype(jnp.bfloat16)
    xv = value.astype(jnp.bfloat16)

    # Fused projections: one x read + one full-width matmul when inputs coincide.
    if (query is key) and (key is value):
        w_qkv = jnp.concatenate([wq, wk, wv], axis=1)            # [Din, 3D]
        b_qkv = jnp.concatenate([bq, bk, bv]).reshape(1, 3 * D)
        q, k, v = project_heads(xq, w_qkv, b_qkv, n_heads, dk)
    elif key is value:
        (q,) = project_heads(xq, wq, bq.reshape(1, D), n_heads, dk)
        w_kv = jnp.concatenate([wk, wv], axis=1)                 # [Din, 2D]
        b_kv = jnp.concatenate([bk, bv]).reshape(1, 2 * D)
        k, v = project_heads(xk, w_kv, b_kv, n_heads, dk)
    else:
        (q,) = project_heads(xq, wq, bq.reshape(1, D), n_heads, dk)
        (k,) = project_heads(xk, wk, bk.reshape(1, D), n_heads, dk)
        (v,) = project_heads(xv, wv, bv.reshape(1, D), n_heads, dk)

    # Mask -> additive bias ({0, -1e9}), matching masked_fill(mask == 0, -1e9).
    if mask is None:
        bias = jnp.zeros((B, 1, Sk), jnp.float32)
    else:
        if mask.ndim == 2:
            mask = mask.reshape(B, 1, Sk)
        if not (mask.ndim == 3 and mask.shape[0] == B and mask.shape[2] == Sk
                and mask.shape[1] in (1, Sq)):
            raise ValueError(f"unsupported mask shape {mask.shape}; "
                             f"expected [B, 1, Sk] or [B, Sq, Sk]")
        bias = jnp.where(mask == 0, jnp.float32(-1e9), jnp.float32(0.0))

    ctx = flash_mha(q, k, v, bias)            # [B, Sq, D] bf16, lane-dense
    return out_project(ctx, w_o, b_o)         # [B, Sq, D] f32


# ---------------------------------------------------------------------------
# Deterministic PyTorch-Linear-style init + pure-JAX f32 reference for validation.
# ---------------------------------------------------------------------------
def init_params(key, d_model):
    def dense(k, out_f, in_f):
        kw, kb = jax.random.split(k)
        lim = 1.0 / math.sqrt(in_f)
        w = jax.random.uniform(kw, (out_f, in_f), jnp.float32, -lim, lim)
        b = jax.random.uniform(kb, (out_f,), jnp.float32, -lim, lim)
        return w, b

    ks = jax.random.split(key, 4)
    wq, bq = dense(ks[0], d_model, d_model)
    wk, bk = dense(ks[1], d_model, d_model)
    wv, bv = dense(ks[2], d_model, d_model)
    wo, bo = dense(ks[3], d_model, d_model)
    return dict(wq=wq, bq=bq, wk=wk, bk=bk, wv=wv, bv=bv, wo=wo, bo=bo)


def _reference_mha(xq, xk, xv, mask, p, h):
    B, Sq, D = xq.shape
    dk = D // h

    def lin(x, w, b):
        return x @ w.T + b

    def heads(x):
        return x.reshape(B, -1, h, dk).transpose(0, 2, 1, 3)

    q = heads(lin(xq, p["wq"], p["bq"]))
    k = heads(lin(xk, p["wk"], p["bk"]))
    v = heads(lin(xv, p["wv"], p["bv"]))
    s = jnp.einsum("bhqd,bhkd->bhqk", q, k) / math.sqrt(dk)
    s = jnp.where(mask[:, None, :, :] == 0.0, -1e9, s)
    a = jax.nn.softmax(s, axis=-1)
    ctx = jnp.einsum("bhqk,bhkd->bhqd", a, v)
    ctx = ctx.transpose(0, 2, 1, 3).reshape(B, Sq, D)
    return lin(ctx, p["wo"], p["bo"])


if __name__ == "__main__":
    B, S, D, H = 2, 8, 32, 4

    key = jax.random.PRNGKey(0)
    kx, kp = jax.random.split(key)
    x = jax.random.normal(kx, (B, S, D), jnp.float32)
    params = init_params(kp, D)

    # --- key-padding mask [B, 1, S]: 1.0 = attend, 0.0 = masked ---------------
    pad_mask = jnp.ones((B, 1, S), jnp.float32).at[1, 0, 6:].set(0.0)
    out = multi_headed_attention(x, x, x, pad_mask, params, H)
    out = jax.block_until_ready(out)
    assert out.shape == (B, S, D) and out.dtype == jnp.float32
    assert bool(jnp.all(jnp.isfinite(out)))
    ref = _reference_mha(x, x, x, pad_mask, params, H)
    err = float(jnp.max(jnp.abs(out - ref)))
    assert err < 5e-2, f"padding-mask mismatch vs reference: max abs err = {err}"

    # --- full [B, Sq, Sk] causal mask (exercises the 3-D mask path) -----------
    causal = jnp.broadcast_to(jnp.tril(jnp.ones((S, S), jnp.float32)), (B, S, S))
    out_c = multi_headed_attention(x, x, x, causal, params, H)
    out_c = jax.block_until_ready(out_c)
    ref_c = _reference_mha(x, x, x, causal, params, H)
    err_c = float(jnp.max(jnp.abs(out_c - ref_c)))
    assert err_c < 5e-2, f"causal-mask mismatch vs reference: max abs err = {err_c}"

    print("KERNEL_OK")
</pallas_src>

<mosaic_0001>
module attributes {stable_mosaic.version = 11 : i64} {
  func.func @_proj_kernel(%arg0: i32, %arg1: i32, %arg2: memref<1x8x32xbf16, #tpu.memory_space<vmem>>, %arg3: memref<32x96xbf16, #tpu.memory_space<vmem>>, %arg4: memref<1x96xf32, #tpu.memory_space<vmem>>, %arg5: memref<1x4x8x8xbf16, #tpu.memory_space<vmem>>, %arg6: memref<1x4x8x8xbf16, #tpu.memory_space<vmem>>, %arg7: memref<1x4x8x8xbf16, #tpu.memory_space<vmem>>) attributes {dimension_semantics = [#tpu.dimension_semantics<parallel>, #tpu.dimension_semantics<parallel>], iteration_bounds = array<i64: 2, 1>, scalar_prefetch = 0 : i64, scratch_operands = 0 : i64, tpu.core_type = #tpu.core_type<tc>, window_params = [{transform_indices = @transform_0, window_bounds = array<i64: 1, 8, 32>}, {pipeline_mode = #tpu.pipeline_mode<synchronous>, transform_indices = @transform_1, window_bounds = array<i64: 32, 96>}, {pipeline_mode = #tpu.pipeline_mode<synchronous>, transform_indices = @transform_2, window_bounds = array<i64: 1, 96>}, {transform_indices = @transform_3, window_bounds = array<i64: 1, 4, 8, 8>}, {transform_indices = @transform_4, window_bounds = array<i64: 1, 4, 8, 8>}, {transform_indices = @transform_5, window_bounds = array<i64: 1, 4, 8, 8>}]} {
    %c0 = arith.constant 0 : index
    %c0_0 = arith.constant 0 : index
    %c0_1 = arith.constant 0 : index
    %0 = vector.load %arg2[%c0, %c0_0, %c0_1] : memref<1x8x32xbf16, #tpu.memory_space<vmem>>, vector<1x8x32xbf16>
    %1 = vector.shape_cast %0 : vector<1x8x32xbf16> to vector<8x32xbf16>
    %c0_2 = arith.constant 0 : index
    %c0_3 = arith.constant 0 : index
    %2 = vector.load %arg3[%c0_2, %c0_3] : memref<32x96xbf16, #tpu.memory_space<vmem>>, vector<32x96xbf16>
    %cst = arith.constant dense<0.000000e+00> : vector<8x96xf32>
    %3 = tpu.matmul %1, %2, %cst {dimension_numbers = #tpu.dot_dimension_numbers<[1], [0], [0], [1], [0, 0, 1, 1], [], []>} : vector<8x32xbf16>, vector<32x96xbf16>, vector<8x96xf32> -> vector<8x96xf32>
    %c0_4 = arith.constant 0 : index
    %c0_5 = arith.constant 0 : index
    %4 = vector.load %arg4[%c0_4, %c0_5] : memref<1x96xf32, #tpu.memory_space<vmem>>, vector<1x96xf32>
    %5 = vector.broadcast %4 : vector<1x96xf32> to vector<8x96xf32>
    %6 = arith.addf %3, %5 : vector<8x96xf32>
    %7 = arith.truncf %6 : vector<8x96xf32> to vector<8x96xbf16>
    %8 = vector.extract_strided_slice %7 {offsets = [0, 0], sizes = [8, 8], strides = [1, 1]} : vector<8x96xbf16> to vector<8x8xbf16>
    %c0_6 = arith.constant 0 : index
    %c0_7 = arith.constant 0 : index
    %c0_8 = arith.constant 0 : index
    %c0_9 = arith.constant 0 : index
    %9 = vector.load %arg5[%c0_6, %c0_7, %c0_8, %c0_9] : memref<1x4x8x8xbf16, #tpu.memory_space<vmem>>, vector<1x1x8x8xbf16>
    %10 = vector.shape_cast %9 : vector<1x1x8x8xbf16> to vector<8x8xbf16>
    %11 = vector.shape_cast %8 : vector<8x8xbf16> to vector<1x1x8x8xbf16>
    tpu.vector_store %arg5[%c0_6, %c0_7, %c0_8, %c0_9], %11 {strides = array<i32>} : memref<1x4x8x8xbf16, #tpu.memory_space<vmem>>, vector<1x1x8x8xbf16>,
    %12 = vector.extract_strided_slice %7 {offsets = [0, 8], sizes = [8, 8], strides = [1, 1]} : vector<8x96xbf16> to vector<8x8xbf16>
    %c0_10 = arith.constant 0 : index
    %c1 = arith.constant 1 : index
    %c0_11 = arith.constant 0 : index
    %c0_12 = arith.constant 0 : index
    %13 = vector.load %arg5[%c0_10, %c1, %c0_11, %c0_12] : memref<1x4x8x8xbf16, #tpu.memory_space<vmem>>, vector<1x1x8x8xbf16>
    %14 = vector.shape_cast %13 : vector<1x1x8x8xbf16> to vector<8x8xbf16>
    %15 = vector.shape_cast %12 : vector<8x8xbf16> to vector<1x1x8x8xbf16>
    tpu.vector_store %arg5[%c0_10, %c1, %c0_11, %c0_12], %15 {strides = array<i32>} : memref<1x4x8x8xbf16, #tpu.memory_space<vmem>>, vector<1x1x8x8xbf16>,
    %16 = vector.extract_strided_slice %7 {offsets = [0, 16], sizes = [8, 8], strides = [1, 1]} : vector<8x96xbf16> to vector<8x8xbf16>
    %c0_13 = arith.constant 0 : index
    %c2 = arith.constant 2 : index
    %c0_14 = arith.constant 0 : index
    %c0_15 = arith.constant 0 : index
    %17 = vector.load %arg5[%c0_13, %c2, %c0_14, %c0_15] : memref<1x4x8x8xbf16, #tpu.memory_space<vmem>>, vector<1x1x8x8xbf16>
    %18 = vector.shape_cast %17 : vector<1x1x8x8xbf16> to vector<8x8xbf16>
    %19 = vector.shape_cast %16 : vector<8x8xbf16> to vector<1x1x8x8xbf16>
    tpu.vector_store %arg5[%c0_13, %c2, %c0_14, %c0_15], %19 {strides = array<i32>} : memref<1x4x8x8xbf16, #tpu.memory_space<vmem>>, vector<1x1x8x8xbf16>,
    %20 = vector.extract_strided_slice %7 {offsets = [0, 24], sizes = [8, 8], strides = [1, 1]} : vector<8x96xbf16> to vector<8x8xbf16>
    %c0_16 = arith.constant 0 : index
    %c3 = arith.constant 3 : index
    %c0_17 = arith.constant 0 : index
    %c0_18 = arith.constant 0 : index
    %21 = vector.load %arg5[%c0_16, %c3, %c0_17, %c0_18] : memref<1x4x8x8xbf16, #tpu.memory_space<vmem>>, vector<1x1x8x8xbf16>
    %22 = vector.shape_cast %21 : vector<1x1x8x8xbf16> to vector<8x8xbf16>
    %23 = vector.shape_cast %20 : vector<8x8xbf16> to vector<1x1x8x8xbf16>
    tpu.vector_store %arg5[%c0_16, %c3, %c0_17, %c0_18], %23 {strides = array<i32>} : memref<1x4x8x8xbf16, #tpu.memory_space<vmem>>, vector<1x1x8x8xbf16>,
    %24 = vector.extract_strided_slice %7 {offsets = [0, 32], sizes = [8, 8], strides = [1, 1]} : vector<8x96xbf16> to vector<8x8xbf16>
    %c0_19 = arith.constant 0 : index
    %c0_20 = arith.constant 0 : index
    %c0_21 = arith.constant 0 : index
    %c0_22 = arith.constant 0 : index
    %25 = vector.load %arg6[%c0_19, %c0_20, %c0_21, %c0_22] : memref<1x4x8x8xbf16, #tpu.memory_space<vmem>>, vector<1x1x8x8xbf16>
    %26 = vector.shape_cast %25 : vector<1x1x8x8xbf16> to vector<8x8xbf16>
    %27 = vector.shape_cast %24 : vector<8x8xbf16> to vector<1x1x8x8xbf16>
    tpu.vector_store %arg6[%c0_19, %c0_20, %c0_21, %c0_22], %27 {strides = array<i32>} : memref<1x4x8x8xbf16, #tpu.memory_space<vmem>>, vector<1x1x8x8xbf16>,
    %28 = vector.extract_strided_slice %7 {offsets = [0, 40], sizes = [8, 8], strides = [1, 1]} : vector<8x96xbf16> to vector<8x8xbf16>
    %c0_23 = arith.constant 0 : index
    %c1_24 = arith.constant 1 : index
    %c0_25 = arith.constant 0 : index
    %c0_26 = arith.constant 0 : index
    %29 = vector.load %arg6[%c0_23, %c1_24, %c0_25, %c0_26] : memref<1x4x8x8xbf16, #tpu.memory_space<vmem>>, vector<1x1x8x8xbf16>
    %30 = vector.shape_cast %29 : vector<1x1x8x8xbf16> to vector<8x8xbf16>
    %31 = vector.shape_cast %28 : vector<8x8xbf16> to vector<1x1x8x8xbf16>
    tpu.vector_store %arg6[%c0_23, %c1_24, %c0_25, %c0_26], %31 {strides = array<i32>} : memref<1x4x8x8xbf16, #tpu.memory_space<vmem>>, vector<1x1x8x8xbf16>,
    %32 = vector.extract_strided_slice %7 {offsets = [0, 48], sizes = [8, 8], strides = [1, 1]} : vector<8x96xbf16> to vector<8x8xbf16>
    %c0_27 = arith.constant 0 : index
    %c2_28 = arith.constant 2 : index
    %c0_29 = arith.constant 0 : index
    %c0_30 = arith.constant 0 : index
    %33 = vector.load %arg6[%c0_27, %c2_28, %c0_29, %c0_30] : memref<1x4x8x8xbf16, #tpu.memory_space<vmem>>, vector<1x1x8x8xbf16>
    %34 = vector.shape_cast %33 : vector<1x1x8x8xbf16> to vector<8x8xbf16>
    %35 = vector.shape_cast %32 : vector<8x8xbf16> to vector<1x1x8x8xbf16>
    tpu.vector_store %arg6[%c0_27, %c2_28, %c0_29, %c0_30], %35 {strides = array<i32>} : memref<1x4x8x8xbf16, #tpu.memory_space<vmem>>, vector<1x1x8x8xbf16>,
    %36 = vector.extract_strided_slice %7 {offsets = [0, 56], sizes = [8, 8], strides = [1, 1]} : vector<8x96xbf16> to vector<8x8xbf16>
    %c0_31 = arith.constant 0 : index
    %c3_32 = arith.constant 3 : index
    %c0_33 = arith.constant 0 : index
    %c0_34 = arith.constant 0 : index
    %37 = vector.load %arg6[%c0_31, %c3_32, %c0_33, %c0_34] : memref<1x4x8x8xbf16, #tpu.memory_space<vmem>>, vector<1x1x8x8xbf16>
    %38 = vector.shape_cast %37 : vector<1x1x8x8xbf16> to vector<8x8xbf16>
    %39 = vector.shape_cast %36 : vector<8x8xbf16> to vector<1x1x8x8xbf16>
    tpu.vector_store %arg6[%c0_31, %c3_32, %c0_33, %c0_34], %39 {strides = array<i32>} : memref<1x4x8x8xbf16, #tpu.memory_space<vmem>>, vector<1x1x8x8xbf16>,
    %40 = vector.extract_strided_slice %7 {offsets = [0, 64], sizes = [8, 8], strides = [1, 1]} : vector<8x96xbf16> to vector<8x8xbf16>
    %c0_35 = arith.constant 0 : index
    %c0_36 = arith.constant 0 : index
    %c0_37 = arith.constant 0 : index
    %c0_38 = arith.constant 0 : index
    %41 = vector.load %arg7[%c0_35, %c0_36, %c0_37, %c0_38] : memref<1x4x8x8xbf16, #tpu.memory_space<vmem>>, vector<1x1x8x8xbf16>
    %42 = vector.shape_cast %41 : vector<1x1x8x8xbf16> to vector<8x8xbf16>
    %43 = vector.shape_cast %40 : vector<8x8xbf16> to vector<1x1x8x8xbf16>
    tpu.vector_store %arg7[%c0_35, %c0_36, %c0_37, %c0_38], %43 {strides = array<i32>} : memref<1x4x8x8xbf16, #tpu.memory_space<vmem>>, vector<1x1x8x8xbf16>,
    %44 = vector.extract_strided_slice %7 {offsets = [0, 72], sizes = [8, 8], strides = [1, 1]} : vector<8x96xbf16> to vector<8x8xbf16>
    %c0_39 = arith.constant 0 : index
    %c1_40 = arith.constant 1 : index
    %c0_41 = arith.constant 0 : index
    %c0_42 = arith.constant 0 : index
    %45 = vector.load %arg7[%c0_39, %c1_40, %c0_41, %c0_42] : memref<1x4x8x8xbf16, #tpu.memory_space<vmem>>, vector<1x1x8x8xbf16>
    %46 = vector.shape_cast %45 : vector<1x1x8x8xbf16> to vector<8x8xbf16>
    %47 = vector.shape_cast %44 : vector<8x8xbf16> to vector<1x1x8x8xbf16>
    tpu.vector_store %arg7[%c0_39, %c1_40, %c0_41, %c0_42], %47 {strides = array<i32>} : memref<1x4x8x8xbf16, #tpu.memory_space<vmem>>, vector<1x1x8x8xbf16>,
    %48 = vector.extract_strided_slice %7 {offsets = [0, 80], sizes = [8, 8], strides = [1, 1]} : vector<8x96xbf16> to vector<8x8xbf16>
    %c0_43 = arith.constant 0 : index
    %c2_44 = arith.constant 2 : index
    %c0_45 = arith.constant 0 : index
    %c0_46 = arith.constant 0 : index
    %49 = vector.load %arg7[%c0_43, %c2_44, %c0_45, %c0_46] : memref<1x4x8x8xbf16, #tpu.memory_space<vmem>>, vector<1x1x8x8xbf16>
    %50 = vector.shape_cast %49 : vector<1x1x8x8xbf16> to vector<8x8xbf16>
    %51 = vector.shape_cast %48 : vector<8x8xbf16> to vector<1x1x8x8xbf16>
    tpu.vector_store %arg7[%c0_43, %c2_44, %c0_45, %c0_46], %51 {strides = array<i32>} : memref<1x4x8x8xbf16, #tpu.memory_space<vmem>>, vector<1x1x8x8xbf16>,
    %52 = vector.extract_strided_slice %7 {offsets = [0, 88], sizes = [8, 8], strides = [1, 1]} : vector<8x96xbf16> to vector<8x8xbf16>
    %c0_47 = arith.constant 0 : index
    %c3_48 = arith.constant 3 : index
    %c0_49 = arith.constant 0 : index
    %c0_50 = arith.constant 0 : index
    %53 = vector.load %arg7[%c0_47, %c3_48, %c0_49, %c0_50] : memref<1x4x8x8xbf16, #tpu.memory_space<vmem>>, vector<1x1x8x8xbf16>
    %54 = vector.shape_cast %53 : vector<1x1x8x8xbf16> to vector<8x8xbf16>
    %55 = vector.shape_cast %52 : vector<8x8xbf16> to vector<1x1x8x8xbf16>
    tpu.vector_store %arg7[%c0_47, %c3_48, %c0_49, %c0_50], %55 {strides = array<i32>} : memref<1x4x8x8xbf16, #tpu.memory_space<vmem>>, vector<1x1x8x8xbf16>,
    return
  }
  func.func @transform_0(%arg0: i32, %arg1: i32) -> (i32, i32, i32) {
    %c0_i32 = arith.constant 0 : i32
    %c0_i32_0 = arith.constant 0 : i32
    return %arg0, %arg1, %c0_i32 : i32, i32, i32
  }
  func.func @transform_1(%arg0: i32, %arg1: i32) -> (i32, i32) {
    %c0_i32 = arith.constant 0 : i32
    %c0_i32_0 = arith.constant 0 : i32
    %c0_i32_1 = arith.constant 0 : i32
    return %c0_i32, %c0_i32_0 : i32, i32
  }
  func.func @transform_2(%arg0: i32, %arg1: i32) -> (i32, i32) {
    %c0_i32 = arith.constant 0 : i32
    %c0_i32_0 = arith.constant 0 : i32
    %c0_i32_1 = arith.constant 0 : i32
    return %c0_i32, %c0_i32_0 : i32, i32
  }
  func.func @transform_3(%arg0: i32, %arg1: i32) -> (i32, i32, i32, i32) {
    %c0_i32 = arith.constant 0 : i32
    %c0_i32_0 = arith.constant 0 : i32
    %c0_i32_1 = arith.constant 0 : i32
    return %arg0, %c0_i32, %arg1, %c0_i32_0 : i32, i32, i32, i32
  }
  func.func @transform_4(%arg0: i32, %arg1: i32) -> (i32, i32, i32, i32) {
    %c0_i32 = arith.constant 0 : i32
    %c0_i32_0 = arith.constant 0 : i32
    %c0_i32_1 = arith.constant 0 : i32
    return %arg0, %c0_i32, %arg1, %c0_i32_0 : i32, i32, i32, i32
  }
  func.func @transform_5(%arg0: i32, %arg1: i32) -> (i32, i32, i32, i32) {
    %c0_i32 = arith.constant 0 : i32
    %c0_i32_0 = arith.constant 0 : i32
    %c0_i32_1 = arith.constant 0 : i32
    return %arg0, %c0_i32, %arg1, %c0_i32_0 : i32, i32, i32, i32
  }
}

</mosaic_0001>

<llo_original>
// kernel: tpu_custom_call.1
$region0: #{tpu_custom_call.1}
  #allocation0 [shape = 'u32[]', space=smem, size = 0x4, offset = 0x4, fixed_abs, tag = 'smem constant byte address 0x4 - core index']
  #allocation1 [shape = 'u32[72,128]{1,0:T(1,128)}', space=vmem, size = 0x9000, scoped, tag = 'internal scratch']
  %s0 = inlined_call_operand.hbm [shape: bf16[2,8,32], index: 0, kind: input, shape index: {}]
  %s1 = inlined_call_operand.hbm [shape: bf16[32,96], index: 1, kind: input, shape index: {}]
  %s2 = inlined_call_operand.vmem [shape: f32[1,96], index: 2, kind: input, shape index: {}]
  %s3 = inlined_call_operand.hbm [shape: bf16[2,4,8,8], index: 3, kind: output, shape index: {0}]
  %s4 = inlined_call_operand.hbm [shape: bf16[2,4,8,8], index: 4, kind: output, shape index: {1}]
  %s5 = inlined_call_operand.hbm [shape: bf16[2,4,8,8], index: 5, kind: output, shape index: {2}]
  %6 = xla_tuple %s3, %s4, %s5
  %s7 = sld [smem:[#allocation0]]
  $region69: #{tpu_custom_call.1} parent=0
    _
  %s9 = ssub.s32 1, %s7
  %s10 = scalar_select 0, %s9, %s7
  $region1: #{tpu_custom_call.1} parent=0
    #allocation2 [shape = 'u8[4096]{0}', space=vmem, size = 0x1000, scoped, tag = 'input window, operand 0']
    #allocation3 [shape = 's32[2]{0}', space=sflag, size = 0x8, scoped, tag = 'scoped memory for tpu_custom_call.1']
    #allocation4 [shape = 's32[2]{0}', space=sflag, size = 0x8, scoped, tag = 'scoped memory for tpu_custom_call.1']
    #allocation5 [shape = 'u8[8192]{0}', space=vmem, size = 0x2000, scoped, tag = 'input window, operand 1, single buffered']
    #allocation6 [shape = 's32[1]{0}', space=sflag, size = 0x4, scoped, tag = 'scoped memory for tpu_custom_call.1']
    #allocation7 [shape = 'u8[16384]{0}', space=vmem, size = 0x4000, scoped, tag = 'output window, operand 0']
    #allocation8 [shape = 'u8[16384]{0}', space=vmem, size = 0x4000, scoped, tag = 'output window, operand 1']
    #allocation9 [shape = 's32[2]{0}', space=sflag, size = 0x8, scoped, tag = 'scoped memory for tpu_custom_call.1']
    #allocation10 [shape = 'u8[16384]{0}', space=vmem, size = 0x4000, scoped, tag = 'output window, operand 2']
    %11 = vsyncpa [#allocation3], 0
    %s12 = scalar_lea.sflag [#allocation3], 1
    %13 = vsyncpa %s12, 0
    %14 = vsyncpa [#allocation6], 0
    %15 = vsyncpa [#allocation4], 0
    %s16 = scalar_lea.sflag [#allocation4], 1
    %17 = vsyncpa %s16, 0
    %18 = vsyncpa [#allocation9], 0
    %s19 = scalar_lea.sflag [#allocation9], 1
    %20 = vsyncpa %s19, 0
    loop: start=0, step=1, limit=4
    $region2: #{tpu_custom_call.1} parent=1 // loop_pre_header
      _
    $region3: #{tpu_custom_call.1} parent=1 // loop_header
      %s22 = sphi 0, %s26
      %p23 = scmp.ge.s32.totalorder %s22, 4
      %s29 = sphi 0, %s41
      %s30 = sphi 0, %s37
      %s31 = sphi 0, %s29
      %s32 = sphi 0, %s30
      %s33 = sphi 0, %s31
      %s34 = sphi 0, %s32
      %s46 = sphi 0, %s48
      %s49 = sphi 0, %s46
      %s50 = sphi 0, %s49
      %s66 = sphi 0, %s50
      %s70 = sphi 0, %s70
      %s72 = sphi 0, %s70
      %s73 = sphi 0, %s72
      %s87 = sphi 0, %s73
      %s91 = sphi 0, %s91
      %s93 = sphi 0, %s91
      %s94 = sphi 0, %s93
      %s108 = sphi 0, %s94
      %s116 = sphi 0, %s118
      %s119 = sphi 0, %s116
      %s120 = sphi 0, %s119
      %s136 = sphi 0, %s120
      %s144 = sphi 0, %s146
      %s147 = sphi 0, %s144
      %s148 = sphi 0, %s147
      %s164 = sphi 0, %s148
      %s172 = sphi 0, %s174
      %s175 = sphi 0, %s172
      %s176 = sphi 0, %s175
      %s192 = sphi 0, %s176
    $region4: #{tpu_custom_call.1} parent=1 // loop_header_branch
      %25 = sbr.rel (%p23) target = $region8
    $region5: #{tpu_custom_call.1} parent=1 // loop_body
      %s27 = ssub.s32 %s22, 1
      %s28 = ssub.s32 %s22, 2
      %s35 = sadd.s32 1, %s30
      %p36 = scmp.ge.s32.totalorder %s35, 1
      %s37 = scalar_select %p36, 0, %s35
      %s38 = sadd.s32 1, %s29
      %s39 = scalar_select %p36, %s38, %s29
      %p40 = scmp.ge.s32.totalorder %s39, 2
      %s41 = scalar_select %p40, 0, %s39
      %s42 = ssub.s32 %s29, %s41
      %s43 = ssub.s32 %s30, %s37
      %s44 = sor.u32 %s42, %s43
      %p45 = scmp.eq.s32.totalorder %s44, 0
      %s47 = sadd.s32 %s46, 1
      %s48 = scalar_select %p45, %s46, %s47
      %p51 = pneg %p45
      %p52 = scmp.eq.s32.totalorder %s22, 1
      %p53 = por %p51, %p52
      %p54 = scmp.ne.s32.totalorder %s46, %s49
      %p55 = scmp.eq.s32.totalorder %s22, 0
      %p56 = por %p54, %p55
      %p57 = scmp.ne.s32.totalorder %s46, %s49
      %p58 = scmp.eq.s32.totalorder %s27, 1
      %p59 = por %p57, %p58
      %p60 = scmp.ne.s32.totalorder %s49, %s50
      %p61 = scmp.eq.s32.totalorder %s27, 0
      %p62 = por %p60, %p61
      %p63 = scmp.ne.s32.totalorder %s49, %s50
      %p64 = scmp.eq.s32.totalorder %s28, 1
      %p65 = por %p63, %p64
      %p67 = scmp.ne.s32.totalorder %s50, %s66
      %p68 = scmp.eq.s32.totalorder %s28, 0
      %p69 = por %p67, %p68
      %s71 = sadd.s32 %s70, 1
      %p74 = scmp.eq.s32.totalorder %s22, 1
      %p75 = scmp.ne.s32.totalorder %s70, %s72
      %p76 = scmp.eq.s32.totalorder %s22, 0
      %p77 = por %p75, %p76
      %p78 = scmp.ne.s32.totalorder %s70, %s72
      %p79 = scmp.eq.s32.totalorder %s27, 1
      %p80 = por %p78, %p79
      %p81 = scmp.ne.s32.totalorder %s72, %s73
      %p82 = scmp.eq.s32.totalorder %s27, 0
      %p83 = por %p81, %p82
      %p84 = scmp.ne.s32.totalorder %s72, %s73
      %p85 = scmp.eq.s32.totalorder %s28, 1
      %p86 = por %p84, %p85
      %p88 = scmp.ne.s32.totalorder %s73, %s87
      %p89 = scmp.eq.s32.totalorder %s28, 0
      %p90 = por %p88, %p89
      %s92 = sadd.s32 %s91, 1
      %p95 = scmp.eq.s32.totalorder %s22, 1
      %p96 = scmp.ne.s32.totalorder %s91, %s93
      %p97 = scmp.eq.s32.totalorder %s22, 0
      %p98 = por %p96, %p97
      %p99 = scmp.ne.s32.totalorder %s91, %s93
      %p100 = scmp.eq.s32.totalorder %s27, 1
      %p101 = por %p99, %p100
      %p102 = scmp.ne.s32.totalorder %s93, %s94
      %p103 = scmp.eq.s32.totalorder %s27, 0
      %p104 = por %p102, %p103
      %p105 = scmp.ne.s32.totalorder %s93, %s94
      %p106 = scmp.eq.s32.totalorder %s28, 1
      %p107 = por %p105, %p106
      %p109 = scmp.ne.s32.totalorder %s94, %s108
      %p110 = scmp.eq.s32.totalorder %s28, 0
      %p111 = por %p109, %p110
      %s112 = ssub.s32 %s29, %s41
      %s113 = ssub.s32 %s30, %s37
      %s114 = sor.u32 %s112, %s113
      %p115 = scmp.eq.s32.totalorder %s114, 0
      %s117 = sadd.s32 %s116, 1
      %s118 = scalar_select %p115, %s116, %s117
      %p121 = pneg %p115
      %p122 = scmp.eq.s32.totalorder %s22, 1
      %p123 = por %p121, %p122
      %p124 = scmp.ne.s32.totalorder %s116, %s119
      %p125 = scmp.eq.s32.totalorder %s22, 0
      %p126 = por %p124, %p125
      %p127 = scmp.ne.s32.totalorder %s116, %s119
      %p128 = scmp.eq.s32.totalorder %s27, 1
      %p129 = por %p127, %p128
      %p130 = scmp.ne.s32.totalorder %s119, %s120
      %p131 = scmp.eq.s32.totalorder %s27, 0
      %p132 = por %p130, %p131
      %p133 = scmp.ne.s32.totalorder %s119, %s120
      %p134 = scmp.eq.s32.totalorder %s28, 1
      %p135 = por %p133, %p134
      %p137 = scmp.ne.s32.totalorder %s120, %s136
      %p138 = scmp.eq.s32.totalorder %s28, 0
      %p139 = por %p137, %p138
      %s140 = ssub.s32 %s29, %s41
      %s141 = ssub.s32 %s30, %s37
      %s142 = sor.u32 %s140, %s141
      %p143 = scmp.eq.s32.totalorder %s142, 0
      %s145 = sadd.s32 %s144, 1
      %s146 = scalar_select %p143, %s144, %s145
      %p149 = pneg %p143
      %p150 = scmp.eq.s32.totalorder %s22, 1
      %p151 = por %p149, %p150
      %p152 = scmp.ne.s32.totalorder %s144, %s147
      %p153 = scmp.eq.s32.totalorder %s22, 0
      %p154 = por %p152, %p153
      %p155 = scmp.ne.s32.totalorder %s144, %s147
      %p156 = scmp.eq.s32.totalorder %s27, 1
      %p157 = por %p155, %p156
      %p158 = scmp.ne.s32.totalorder %s147, %s148
      %p159 = scmp.eq.s32.totalorder %s27, 0
      %p160 = por %p158, %p159
      %p161 = scmp.ne.s32.totalorder %s147, %s148
      %p162 = scmp.eq.s32.totalorder %s28, 1
      %p163 = por %p161, %p162
      %p165 = scmp.ne.s32.totalorder %s148, %s164
      %p166 = scmp.eq.s32.totalorder %s28, 0
      %p167 = por %p165, %p166
      %s168 = ssub.s32 %s29, %s41
      %s169 = ssub.s32 %s30, %s37
      %s170 = sor.u32 %s168, %s169
      %p171 = scmp.eq.s32.totalorder %s170, 0
      %s173 = sadd.s32 %s172, 1
      %s174 = scalar_select %p171, %s172, %s173
      %p177 = pneg %p171
      %p178 = scmp.eq.s32.totalorder %s22, 1
      %p179 = por %p177, %p178
      %p180 = scmp.ne.s32.totalorder %s172, %s175
      %p181 = scmp.eq.s32.totalorder %s22, 0
      %p182 = por %p180, %p181
      %p183 = scmp.ne.s32.totalorder %s172, %s175
      %p184 = scmp.eq.s32.totalorder %s27, 1
      %p185 = por %p183, %p184
      %p186 = scmp.ne.s32.totalorder %s175, %s176
      %p187 = scmp.eq.s32.totalorder %s27, 0
      %p188 = por %p186, %p187
      %p189 = scmp.ne.s32.totalorder %s175, %s176
      %p190 = scmp.eq.s32.totalorder %s28, 1
      %p191 = por %p189, %p190
      %p193 = scmp.ne.s32.totalorder %s176, %s192
      %p194 = scmp.eq.s32.totalorder %s28, 0
      %p195 = por %p193, %p194
      %p196 = scmp.le.s32.totalorder 1, %s22
      %p197 = scmp.lt.s32.totalorder %s22, 3
      %p198 = pnand %p196, %p197
      %p199 = pneg %p198
      // Predicated region
      $region9: #{tpu_custom_call.1} parent=5 // pred_check
        _
      $region10: #{tpu_custom_call.1} parent=5 // pred_check_branch
        %201 = sbr.rel (%p198) target = $region12
      $region11: #{tpu_custom_call.1} parent=5 // pred_region
        %s202 = ssub.s32 %s22, 1
        // Predicated region
        $region13: #{tpu_custom_call.1} parent=11 // pred_check
          %p203 = pneg %p83
        $region14: #{tpu_custom_call.1} parent=11 // pred_check_branch
          %205 = sbr.rel (%p203) target = $region16
        $region15: #{tpu_custom_call.1} parent=11 // pred_region
          %207 = vsyncadd [#allocation6], 0
          %s208 = sshll.u32 %s1, 4
          %s209 = int_to_ptr.hbm [resolvable:$true] %s208
          %s210 = sshll.u32 [#allocation5], 4
          %s211 = int_to_ptr.vmem [resolvable:$true] %s210
          %216 = dma.hbm_to_vmem [thread:$0]  %s209, 256, %s211, [#allocation6], 64, 64, 4
        $region16: #{tpu_custom_call.1} parent=11 // pred_fallthru
          _
        // Predicated region
        $region17: #{tpu_custom_call.1} parent=11 // pred_check
          %p217 = pneg %p104
        $region18: #{tpu_custom_call.1} parent=11 // pred_check_branch
          %219 = sbr.rel (%p217) target = $region20
        $region19: #{tpu_custom_call.1} parent=11 // pred_region
          _
        $region20: #{tpu_custom_call.1} parent=11 // pred_fallthru
          _
      $region12: #{tpu_custom_call.1} parent=5 // pred_fallthru
        _
      %p220 = scmp.lt.s32.totalorder %s22, 2
      // Predicated region
      $region21: #{tpu_custom_call.1} parent=5 // pred_check
        %p221 = pneg %p220
      $region22: #{tpu_custom_call.1} parent=5 // pred_check_branch
        %223 = sbr.rel (%p221) target = $region24
      $region23: #{tpu_custom_call.1} parent=5 // pred_region
        // Predicated region
        $region25: #{tpu_custom_call.1} parent=23 // pred_check
          %p224 = pneg %p56
        $region26: #{tpu_custom_call.1} parent=23 // pred_check_branch
          %226 = sbr.rel (%p224) target = $region28
        $region27: #{tpu_custom_call.1} parent=23 // pred_region
          %s227 = sand.u32 %s46, 1
          %s228 = scalar_lea.sflag [#allocation3], %s227
          %s229 = sand.u32 %s46, 1
          %s230 = smul.addr %s229, 4
          %s231 = scalar_lea.vmem [#allocation2], %s230
          %233 = vsyncadd %s228, 0
          %s234 = sadd.s32 %s30, %s29
          %s235 = smul.addr %s234, 4
          %s236 = scalar_lea.hbm %s0, %s235
          %s238 = sshll.u32 %s236, 4
          %s239 = int_to_ptr.hbm [resolvable:$true] %s238
          %s240 = sshll.u32 %s231, 4
          %s241 = int_to_ptr.vmem [resolvable:$true] %s240
          %243 = dma.hbm_to_vmem [thread:$0]  %s239, 64, %s241, %s228
        $region28: #{tpu_custom_call.1} parent=23 // pred_fallthru
          _
      $region24: #{tpu_custom_call.1} parent=5 // pred_fallthru
        _
      %p244 = scmp.le.s32.totalorder 1, %s22
      %p245 = scmp.lt.s32.totalorder %s22, 3
      %p246 = pnand %p244, %p245
      %p247 = pneg %p246
      // Predicated region
      $region29: #{tpu_custom_call.1} parent=5 // pred_check
        _
      $region30: #{tpu_custom_call.1} parent=5 // pred_check_branch
        %249 = sbr.rel (%p246) target = $region32
      $region31: #{tpu_custom_call.1} parent=5 // pred_region
        %s250 = ssub.s32 %s22, 1
        %s251 = sand.u32 %s49, 1
        %s252 = scalar_lea.sflag [#allocation3], %s251
        %s253 = sand.u32 %s49, 1
        %s254 = smul.addr %s253, 4
        %s255 = scalar_lea.vmem [#allocation2], %s254
        // Predicated region
        $region33: #{tpu_custom_call.1} parent=31 // pred_check
          %p256 = pneg %p62
        $region34: #{tpu_custom_call.1} parent=31 // pred_check_branch
          %258 = sbr.rel (%p256) target = $region36
        $region35: #{tpu_custom_call.1} parent=31 // pred_region
          %260 = dma.done %s252, 64
        $region36: #{tpu_custom_call.1} parent=31 // pred_fallthru
          _
        // Predicated region
        $region37: #{tpu_custom_call.1} parent=31 // pred_check
          %p261 = pneg %p83
        $region38: #{tpu_custom_call.1} parent=31 // pred_check_branch
          %263 = sbr.rel (%p261) target = $region40
        $region39: #{tpu_custom_call.1} parent=31 // pred_region
          %265 = dma.done [#allocation6], 256
        $region40: #{tpu_custom_call.1} parent=31 // pred_fallthru
          _
        %s266 = sand.u32 %s49, 1
        %s267 = scalar_lea.sflag [#allocation3], %s266
        %s268 = sand.u32 %s49, 1
        %s269 = smul.addr %s268, 4
        %s270 = scalar_lea.vmem [#allocation2], %s269
        %p271 = pneg %p62
        %p272 = pneg %p59
        %p273 = pneg %p83
        %p274 = pneg %p80
        %p275 = pneg %p104
        %p276 = pneg %p101
        %p277 = pneg %p132
        %p278 = pneg %p129
        %s279 = sand.u32 %s119, 1
        %s280 = scalar_lea.sflag [#allocation4], %s279
        %s281 = sand.u32 %s119, 1
        %s282 = smul.addr %s281, 16
        %s283 = scalar_lea.vmem [#allocation7], %s282
        %p284 = pneg %p160
        %p285 = pneg %p157
        %s286 = sand.u32 %s27, 1
        %s287 = scalar_lea.sflag [#allocation9], %s286
        %s288 = sand.u32 %s147, 1
        %s289 = smul.addr %s288, 16
        %s290 = scalar_lea.vmem [#allocation8], %s289
        %p291 = pneg %p188
        %p292 = pneg %p185
        %s293 = sand.u32 %s27, 1
        %s294 = scalar_lea.sflag [#allocation9], %s293
        %s295 = sand.u32 %s175, 1
        %s296 = smul.addr %s295, 16
        %s297 = scalar_lea.vmem [#allocation10], %s296
        %v299 = vld [vmem:[%s255] sm:$0xf]
        %v300 = vld [vmem:[#allocation5] sm:$0xf]
        %v301 = vld [vmem:[#allocation5 + $0x4] sm:$0xf]
        %v302 = vld [vmem:[#allocation5 + $0x8] sm:$0xf]
        %v303 = vld [vmem:[#allocation5 + $0xc] sm:$0xf]
        %v304 = vld [vmem:[%s2] sm:$0x1]
        %v306 = vperm.slane %v304, 0
        %v312 = vunpack.c.l.b16 %v300
        %v313 = vunpack.c.l.b16 %v301
        %v314 = vunpack.c.l.b16 %v302
        %v315 = vunpack.c.l.b16 %v303
        %v316 = vpack.c.b16 %v313, %v312
        %v317 = vpack.c.b16 %v315, %v314
        %vm320 = vcmask 261120
        %v322 = vsel %vm320, %v299, 0
        %324 = vmatpush.bf16.msra.mxu0 0
        %325 = vmatpush.bf16.msra.mxu0 0
        %326 = vmatpush.bf16.msra.mxu0 0
        %327 = vmatpush.bf16.msra.mxu0 0
        %328 = vmatpush.bf16.msra.mxu0 0
        %329 = vmatpush.bf16.msra.mxu0 0
        %330 = vmatpush.bf16.msra.mxu0 %v317
        %331 = vmatpush.bf16.msra.mxu0 %v316
        %332 = vmatmul.bf16.gmra.mxu0 %v322
        %v333 = vpop.f32.mrf.mxu0
        %v334 = vadd.f32 %v306, %v333
        %v335 = vpop.f32.mrf.mxu0
        %336 = vdwg.mxu0
        %v337 = vpack.c.bf16 %v334, %v334
        %vm338 = vcmask 60416
        %339 = vst.msk [vmem:[%s283] sm:$0xf] %vm338, %v337
        %341 = vrot.lane.b32.xlu0 %v337, 120
        %v342 = vpop.permute.xlu0 %341
        %s344 = scalar_lea.vmem %s283, 4 [#allocation7]
        %345 = vst.msk [vmem:[%s344] sm:$0xf] %vm338, %v342
        %346 = vrot.lane.b32.xlu0 %v337, 112
        %v347 = vpop.permute.xlu0 %346
        %s349 = scalar_lea.vmem %s283, 8 [#allocation7]
        %350 = vst.msk [vmem:[%s349] sm:$0xf] %vm338, %v347
        %351 = vrot.lane.b32.xlu0 %v337, 104
        %v352 = vpop.permute.xlu0 %351
        %s354 = scalar_lea.vmem %s283, 12 [#allocation7]
        %355 = vst.msk [vmem:[%s354] sm:$0xf] %vm338, %v352
        %356 = vrot.lane.b32.xlu0 %v337, 96
        %v357 = vpop.permute.xlu0 %356
        %359 = vst.msk [vmem:[%s290] sm:$0xf] %vm338, %v357
        %360 = vrot.lane.b32.xlu0 %v337, 88
        %v361 = vpop.permute.xlu0 %360
        %s363 = scalar_lea.vmem %s290, 4 [#allocation8]
        %364 = vst.msk [vmem:[%s363] sm:$0xf] %vm338, %v361
        %365 = vrot.lane.b32.xlu0 %v337, 80
        %v366 = vpop.permute.xlu0 %365
        %s368 = scalar_lea.vmem %s290, 8 [#allocation8]
        %369 = vst.msk [vmem:[%s368] sm:$0xf] %vm338, %v366
        %370 = vrot.lane.b32.xlu0 %v337, 72
        %v371 = vpop.permute.xlu0 %370
        %s373 = scalar_lea.vmem %s290, 12 [#allocation8]
        %374 = vst.msk [vmem:[%s373] sm:$0xf] %vm338, %v371
        %375 = vrot.lane.b32.xlu0 %v337, 64
        %v376 = vpop.permute.xlu0 %375
        %378 = vst.msk [vmem:[%s297] sm:$0xf] %vm338, %v376
        %379 = vrot.lane.b32.xlu0 %v337, 56
        %v380 = vpop.permute.xlu0 %379
        %s382 = scalar_lea.vmem %s297, 4 [#allocation10]
        %383 = vst.msk [vmem:[%s382] sm:$0xf] %vm338, %v380
        %384 = vrot.lane.b32.xlu0 %v337, 48
        %v385 = vpop.permute.xlu0 %384
        %s387 = scalar_lea.vmem %s297, 8 [#allocation10]
        %388 = vst.msk [vmem:[%s387] sm:$0xf] %vm338, %v385
        %389 = vrot.lane.b32.xlu0 %v337, 40
        %v390 = vpop.permute.xlu0 %389
        %s392 = scalar_lea.vmem %s297, 12 [#allocation10]
        %393 = vst.msk [vmem:[%s392] sm:$0xf] %vm338, %v390
        %s394 = sand.u32 %s119, 1
        %s395 = scalar_lea.sflag [#allocation4], %s394
        %s396 = sand.u32 %s119, 1
        %s397 = smul.addr %s396, 16
        %s398 = scalar_lea.vmem [#allocation7], %s397
        %s399 = sand.u32 %s27, 1
        %s400 = scalar_lea.sflag [#allocation9], %s399
        %s401 = sand.u32 %s147, 1
        %s402 = smul.addr %s401, 16
        %s403 = scalar_lea.vmem [#allocation8], %s402
        %s404 = sand.u32 %s27, 1
        %s405 = scalar_lea.sflag [#allocation9], %s404
        %s406 = sand.u32 %s175, 1
        %s407 = smul.addr %s406, 16
        %s408 = scalar_lea.vmem [#allocation10], %s407
        // Predicated region
        $region41: #{tpu_custom_call.1} parent=31 // pred_check
          %p409 = pneg %p129
        $region42: #{tpu_custom_call.1} parent=31 // pred_check_branch
          %411 = sbr.rel (%p409) target = $region44
        $region43: #{tpu_custom_call.1} parent=31 // pred_region
          %413 = vsyncadd %s395, 0
          %s414 = smul.addr %s31, 4
          %s415 = sadd.s32 %s32, %s414
          %s416 = smul.addr %s415, 4
          %s417 = scalar_lea.hbm %s3, %s416
          %s418 = sshll.u32 %s398, 4
          %s419 = int_to_ptr.vmem [resolvable:$true] %s418
          %s420 = sshll.u32 %s417, 4
          %s421 = int_to_ptr.hbm [resolvable:$true] %s420
          %426 = dma.vmem_to_hbm [thread:$0]  %s419, 256, %s421, %s395, 64, 64, 4
        $region44: #{tpu_custom_call.1} parent=31 // pred_fallthru
          _
        // Predicated region
        $region45: #{tpu_custom_call.1} parent=31 // pred_check
          %p427 = pneg %p157
        $region46: #{tpu_custom_call.1} parent=31 // pred_check_branch
          %429 = sbr.rel (%p427) target = $region48
        $region47: #{tpu_custom_call.1} parent=31 // pred_region
          %431 = vsyncadd %s400, 0
          %s432 = smul.addr %s31, 4
          %s433 = sadd.s32 %s32, %s432
          %s434 = smul.addr %s433, 4
          %s435 = scalar_lea.hbm %s4, %s434
          %s436 = sshll.u32 %s403, 4
          %s437 = int_to_ptr.vmem [resolvable:$true] %s436
          %s438 = sshll.u32 %s435, 4
          %s439 = int_to_ptr.hbm [resolvable:$true] %s438
          %444 = dma.vmem_to_hbm [thread:$0]  %s437, 256, %s439, %s400, 64, 64, 4
        $region48: #{tpu_custom_call.1} parent=31 // pred_fallthru
          _
        // Predicated region
        $region49: #{tpu_custom_call.1} parent=31 // pred_check
          %p445 = pneg %p185
        $region50: #{tpu_custom_call.1} parent=31 // pred_check_branch
          %447 = sbr.rel (%p445) target = $region52
        $region51: #{tpu_custom_call.1} parent=31 // pred_region
          %449 = vsyncadd %s405, 0
          %s450 = smul.addr %s31, 4
          %s451 = sadd.s32 %s32, %s450
          %s452 = smul.addr %s451, 4
          %s453 = scalar_lea.hbm %s5, %s452
          %s454 = sshll.u32 %s408, 4
          %s455 = int_to_ptr.vmem [resolvable:$true] %s454
          %s456 = sshll.u32 %s453, 4
          %s457 = int_to_ptr.hbm [resolvable:$true] %s456
          %462 = dma.vmem_to_hbm [thread:$0]  %s455, 256, %s457, %s405, 64, 64, 4
        $region52: #{tpu_custom_call.1} parent=31 // pred_fallthru
          _
      $region32: #{tpu_custom_call.1} parent=5 // pred_fallthru
        _
      %p463 = scmp.le.s32.totalorder 2, %s22
      // Predicated region
      $region53: #{tpu_custom_call.1} parent=5 // pred_check
        %p464 = pneg %p463
      $region54: #{tpu_custom_call.1} parent=5 // pred_check_branch
        %466 = sbr.rel (%p464) target = $region56
      $region55: #{tpu_custom_call.1} parent=5 // pred_region
        %s467 = ssub.s32 %s22, 2
        // Predicated region
        $region57: #{tpu_custom_call.1} parent=55 // pred_check
          %p468 = pneg %p135
        $region58: #{tpu_custom_call.1} parent=55 // pred_check_branch
          %470 = sbr.rel (%p468) target = $region60
        $region59: #{tpu_custom_call.1} parent=55 // pred_region
          %s471 = sand.u32 %s120, 1
          %s472 = scalar_lea.sflag [#allocation4], %s471
          %s473 = sand.u32 %s120, 1
          %s474 = smul.addr %s473, 16
          %s475 = scalar_lea.vmem [#allocation7], %s474
          %477 = dma.done %s472, 256
        $region60: #{tpu_custom_call.1} parent=55 // pred_fallthru
          _
        // Predicated region
        $region61: #{tpu_custom_call.1} parent=55 // pred_check
          %p478 = pneg %p163
        $region62: #{tpu_custom_call.1} parent=55 // pred_check_branch
          %480 = sbr.rel (%p478) target = $region64
        $region63: #{tpu_custom_call.1} parent=55 // pred_region
          %s481 = sand.u32 %s28, 1
          %s482 = scalar_lea.sflag [#allocation9], %s481
          %s483 = sand.u32 %s148, 1
          %s484 = smul.addr %s483, 16
          %s485 = scalar_lea.vmem [#allocation8], %s484
          %487 = dma.done %s482, 256
        $region64: #{tpu_custom_call.1} parent=55 // pred_fallthru
          _
        // Predicated region
        $region65: #{tpu_custom_call.1} parent=55 // pred_check
          %p488 = pneg %p191
        $region66: #{tpu_custom_call.1} parent=55 // pred_check_branch
          %490 = sbr.rel (%p488) target = $region68
        $region67: #{tpu_custom_call.1} parent=55 // pred_region
          %s491 = sand.u32 %s28, 1
          %s492 = scalar_lea.sflag [#allocation9], %s491
          %s493 = sand.u32 %s176, 1
          %s494 = smul.addr %s493, 16
          %s495 = scalar_lea.vmem [#allocation10], %s494
          %497 = dma.done %s492, 256
        $region68: #{tpu_custom_call.1} parent=55 // pred_fallthru
          _
      $region56: #{tpu_custom_call.1} parent=5 // pred_fallthru
        _
    $region6: #{tpu_custom_call.1} parent=1 // loop_footer
      %s26 = sadd.s32 1, %s22
    $region7: #{tpu_custom_call.1} parent=1 // loop_footer_branch
      %21 = sbr.rel target = $region3
    $region8: #{tpu_custom_call.1} parent=1 // loop_exit
      _
    %498 = vsyncpa [#allocation3], 1
    %s499 = scalar_lea.sflag [#allocation3], 1
    %500 = vsyncpa %s499, 1
    %501 = vsyncpa [#allocation6], 1
    %502 = vsyncpa [#allocation4], 1
    %s503 = scalar_lea.sflag [#allocation4], 1
    %504 = vsyncpa %s503, 1
    %505 = vsyncpa [#allocation9], 1
    %s506 = scalar_lea.sflag [#allocation9], 1
    %507 = vsyncpa %s506, 1

</llo_original>
